<compile_context>
chip_gen: v7x
topology: tpu7x:2x2x1
jax: 0.10.0
libtpu: 0.0.40
codegen_flags: <defaults>
</compile_context>

<pallas_src>
import jax
import jax.numpy as jnp
from jax.experimental import pallas as pl
from jax.experimental.pallas import tpu as pltpu  # noqa: F401  (TPU backend)


def _round_up(x, m):
    return (x + m - 1) // m * m


def conv1x1_fused_kernel(x_ref, w_ref, b_ref, b1_ref, n_ref, o_ref):
    # MXU matmul over channels; conv bias + bias1 + noise ride in VALU slack.
    acc = jnp.dot(x_ref[...], w_ref[...], preferred_element_type=jnp.float32)
    # single fused epilogue store (keeps the lone v5e vst slot from binding)
    o_ref[...] = acc + b_ref[...] + b1_ref[...] + n_ref[...]


@jax.jit
def _conv1x1_pad1_fused(x_nchw, wm, b_row, bias1_nchw, noise_nchw):
    """1x1 conv (stride=1, padding=1) + conv bias + bias1 + noise, one pallas_call.

    x_nchw:      (1, Cin, H, W)       float32
    wm:          (Cin, Cout)          float32   (pre-transposed weight)
    b_row:       (1, Cout)            float32   (conv bias)
    bias1_nchw:  (1, Cout, H+2, W+2)  float32
    noise_nchw:  (1, Cout, H+2, W+2)  float32
    returns:     (1, Cout, H+2, W+2)  float32
    """
    _, Cin, H, W = x_nchw.shape
    Cout = wm.shape[1]
    Ho, Wo = H + 2, W + 2              # kernel=1, stride=1, padding=1
    M = Ho * Wo
    Mp = _round_up(M, 8)               # only the sublane (M) dim is rounded

    # zero-pad spatially; 1x1 conv on the padded input == per-pixel channel matmul
    x_pad = jnp.pad(x_nchw, ((0, 0), (0, 0), (1, 1), (1, 1)))
    xm = x_pad[0].transpose(1, 2, 0).reshape(M, Cin)           # (M, K)
    b1m = bias1_nchw[0].transpose(1, 2, 0).reshape(M, Cout)    # (M, N)
    nm = noise_nchw[0].transpose(1, 2, 0).reshape(M, Cout)     # (M, N)

    xm = jnp.pad(xm, ((0, Mp - M), (0, 0)))
    b1m = jnp.pad(b1m, ((0, Mp - M), (0, 0)))
    nm = jnp.pad(nm, ((0, Mp - M), (0, 0)))

    out = pl.pallas_call(
        conv1x1_fused_kernel,
        out_shape=jax.ShapeDtypeStruct((Mp, Cout), jnp.float32),
        grid=(1,),
        in_specs=[
            pl.BlockSpec((Mp, Cin), lambda i: (0, 0)),    # X  (full-dim block)
            pl.BlockSpec((Cin, Cout), lambda i: (0, 0)),  # W  (full-dim block)
            pl.BlockSpec((1, Cout), lambda i: (0, 0)),    # conv bias row
            pl.BlockSpec((Mp, Cout), lambda i: (0, 0)),   # bias1
            pl.BlockSpec((Mp, Cout), lambda i: (0, 0)),   # noise
        ],
        out_specs=pl.BlockSpec((Mp, Cout), lambda i: (0, 0)),
    )(xm, wm, b_row, b1m, nm)

    # consumer requires NCHW; the slice + transpose fuse under jit
    y = out[:M, :].reshape(Ho, Wo, Cout).transpose(2, 0, 1)[None]
    return y


class Model:
    """JAX/Pallas port of torch Model (Conv2d(288, 560, 1, stride=1, padding=1))."""

    CIN, COUT = 288, 560

    def __init__(self, key):
        kw, kb = jax.random.split(key)
        fan_in = float(self.CIN * 1 * 1)
        bound = 1.0 / (fan_in ** 0.5)
        # deterministic init mimicking torch's default uniform(-1/sqrt(fan_in), ...)
        self.weight = jax.random.uniform(
            kw, (self.COUT, self.CIN, 1, 1), jnp.float32, -bound, bound)
        self.bias = jax.random.uniform(
            kb, (self.COUT,), jnp.float32, -bound, bound)
        # one-time weight / bias prep (hoisted out of forward)
        self.weight_mat = jnp.asarray(self.weight[:, :, 0, 0].transpose(1, 0))  # (Cin, Cout)
        self.bias_row = jnp.asarray(self.bias.reshape(1, self.COUT))            # (1, Cout)

    def forward(self, x1, bias1=None, other=True, *, noise_key=jax.random.PRNGKey(1)):
        _, _, H, W = x1.shape
        out_shape = (1, self.COUT, H + 2, W + 2)
        if bias1 is None:
            # torch computes conv + randn then falls through without returning them.
            # The results are discarded, so skip the dead kernel call and return None.
            return None
        # v2 = conv(x1) + bias1 ; v4 = v2 + randn(v2.shape)   (other == True path)
        noise = jax.random.normal(noise_key, out_shape, jnp.float32)
        v4 = _conv1x1_pad1_fused(x1, self.weight_mat, self.bias_row, bias1, noise)
        if other:
            return v4
        # TODO(synk): torch raises UnboundLocalError when other != True; not emulated.
        return v4


if __name__ == "__main__":
    key = jax.random.PRNGKey(0)
    k_param, k_x, k_b1 = jax.random.split(key, 3)

    model = Model(k_param)
    x1 = jax.random.normal(k_x, (1, 288, 7, 7), jnp.float32)
    bias1 = jax.random.normal(k_b1, (1, 560, 9, 9), jnp.float32)

    out = model.forward(x1, bias1=bias1, other=True)
    out = jax.block_until_ready(out)
    assert out.shape == (1, 560, 9, 9) and out.dtype == jnp.float32

    # reference check (pure JAX) of the same math
    x_pad = jnp.pad(x1, ((0, 0), (0, 0), (1, 1), (1, 1)))
    v1_ref = jnp.einsum("nchw,oc->nohw", x_pad, model.weight[:, :, 0, 0]) \
        + model.bias[None, :, None, None]
    noise = jax.random.normal(jax.random.PRNGKey(1), (1, 560, 9, 9), jnp.float32)
    ref = v1_ref + bias1 + noise
    assert jnp.allclose(out, ref, atol=1e-4, rtol=1e-4)

    # bias1 is None path returns None (matches torch falling off the function)
    assert model.forward(x1) is None

    print("KERNEL_OK")
</pallas_src>

<mosaic_0001>
module attributes {stable_mosaic.version = 11 : i64} {
  func.func @conv1x1_fused_kernel(%arg0: i32, %arg1: memref<88x288xf32, #tpu.memory_space<vmem>>, %arg2: memref<288x560xf32, #tpu.memory_space<vmem>>, %arg3: memref<1x560xf32, #tpu.memory_space<vmem>>, %arg4: memref<88x560xf32, #tpu.memory_space<vmem>>, %arg5: memref<88x560xf32, #tpu.memory_space<vmem>>, %arg6: memref<88x560xf32, #tpu.memory_space<vmem>>) attributes {dimension_semantics = [#tpu.dimension_semantics<arbitrary>], iteration_bounds = array<i64: 1>, scalar_prefetch = 0 : i64, scratch_operands = 0 : i64, tpu.core_type = #tpu.core_type<tc>, window_params = [{pipeline_mode = #tpu.pipeline_mode<synchronous>, transform_indices = @transform_0, window_bounds = array<i64: 88, 288>}, {pipeline_mode = #tpu.pipeline_mode<synchronous>, transform_indices = @transform_1, window_bounds = array<i64: 288, 560>}, {pipeline_mode = #tpu.pipeline_mode<synchronous>, transform_indices = @transform_2, window_bounds = array<i64: 1, 560>}, {pipeline_mode = #tpu.pipeline_mode<synchronous>, transform_indices = @transform_3, window_bounds = array<i64: 88, 560>}, {pipeline_mode = #tpu.pipeline_mode<synchronous>, transform_indices = @transform_4, window_bounds = array<i64: 88, 560>}, {pipeline_mode = #tpu.pipeline_mode<synchronous>, transform_indices = @transform_5, window_bounds = array<i64: 88, 560>}]} {
    %c0 = arith.constant 0 : index
    %c0_0 = arith.constant 0 : index
    %0 = vector.load %arg1[%c0, %c0_0] : memref<88x288xf32, #tpu.memory_space<vmem>>, vector<88x288xf32>
    %c0_1 = arith.constant 0 : index
    %c0_2 = arith.constant 0 : index
    %1 = vector.load %arg2[%c0_1, %c0_2] : memref<288x560xf32, #tpu.memory_space<vmem>>, vector<288x560xf32>
    %cst = arith.constant dense<0.000000e+00> : vector<88x560xf32>
    %2 = tpu.matmul %0, %1, %cst {dimension_numbers = #tpu.dot_dimension_numbers<[1], [0], [0], [1], [0, 0, 1, 1], [], []>} : vector<88x288xf32>, vector<288x560xf32>, vector<88x560xf32> -> vector<88x560xf32>
    %c0_3 = arith.constant 0 : index
    %c0_4 = arith.constant 0 : index
    %3 = vector.load %arg3[%c0_3, %c0_4] : memref<1x560xf32, #tpu.memory_space<vmem>>, vector<1x560xf32>
    %4 = vector.broadcast %3 : vector<1x560xf32> to vector<88x560xf32>
    %5 = arith.addf %2, %4 : vector<88x560xf32>
    %c0_5 = arith.constant 0 : index
    %c0_6 = arith.constant 0 : index
    %6 = vector.load %arg4[%c0_5, %c0_6] : memref<88x560xf32, #tpu.memory_space<vmem>>, vector<88x560xf32>
    %7 = arith.addf %5, %6 : vector<88x560xf32>
    %c0_7 = arith.constant 0 : index
    %c0_8 = arith.constant 0 : index
    %8 = vector.load %arg5[%c0_7, %c0_8] : memref<88x560xf32, #tpu.memory_space<vmem>>, vector<88x560xf32>
    %9 = arith.addf %7, %8 : vector<88x560xf32>
    %c0_9 = arith.constant 0 : index
    %c0_10 = arith.constant 0 : index
    %10 = vector.load %arg6[%c0_9, %c0_10] : memref<88x560xf32, #tpu.memory_space<vmem>>, vector<88x560xf32>
    tpu.vector_store %arg6[%c0_9, %c0_10], %9 {strides = array<i32>} : memref<88x560xf32, #tpu.memory_space<vmem>>, vector<88x560xf32>,
    return
  }
  func.func @transform_0(%arg0: i32) -> (i32, i32) {
    %c0_i32 = arith.constant 0 : i32
    %c0_i32_0 = arith.constant 0 : i32
    %c0_i32_1 = arith.constant 0 : i32
    return %c0_i32, %c0_i32_0 : i32, i32
  }
  func.func @transform_1(%arg0: i32) -> (i32, i32) {
    %c0_i32 = arith.constant 0 : i32
    %c0_i32_0 = arith.constant 0 : i32
    %c0_i32_1 = arith.constant 0 : i32
    return %c0_i32, %c0_i32_0 : i32, i32
  }
  func.func @transform_2(%arg0: i32) -> (i32, i32) {
    %c0_i32 = arith.constant 0 : i32
    %c0_i32_0 = arith.constant 0 : i32
    %c0_i32_1 = arith.constant 0 : i32
    return %c0_i32, %c0_i32_0 : i32, i32
  }
  func.func @transform_3(%arg0: i32) -> (i32, i32) {
    %c0_i32 = arith.constant 0 : i32
    %c0_i32_0 = arith.constant 0 : i32
    %c0_i32_1 = arith.constant 0 : i32
    return %c0_i32, %c0_i32_0 : i32, i32
  }
  func.func @transform_4(%arg0: i32) -> (i32, i32) {
    %c0_i32 = arith.constant 0 : i32
    %c0_i32_0 = arith.constant 0 : i32
    %c0_i32_1 = arith.constant 0 : i32
    return %c0_i32, %c0_i32_0 : i32, i32
  }
  func.func @transform_5(%arg0: i32) -> (i32, i32) {
    %c0_i32 = arith.constant 0 : i32
    %c0_i32_0 = arith.constant 0 : i32
    %c0_i32_1 = arith.constant 0 : i32
    return %c0_i32, %c0_i32_0 : i32, i32
  }
}

</mosaic_0001>

<llo_original>
// kernel: _conv1x1_pad1_fused.1
$region0: #{_conv1x1_pad1_fused.1}
  #allocation0 [shape = 'u32[]', space=smem, size = 0x4, offset = 0x4, fixed_abs, tag = 'smem constant byte address 0x4 - core index']
  #allocation1 [shape = 'u32[144,128]{1,0:T(1,128)}', space=vmem, size = 0x12000, scoped, tag = 'internal scratch']
  %s0 = inlined_call_operand.vmem [shape: f32[88,288], index: 0, kind: input, shape index: {}]
  %s1 = inlined_call_operand.vmem [shape: f32[288,560], index: 1, kind: input, shape index: {}]
  %s2 = inlined_call_operand.vmem [shape: f32[1,560], index: 2, kind: input, shape index: {}]
  %s3 = inlined_call_operand.vmem [shape: f32[88,560], index: 3, kind: input, shape index: {}]
  %s4 = inlined_call_operand.vmem [shape: f32[88,560], index: 4, kind: input, shape index: {}]
  %s5 = inlined_call_operand.vmem [shape: f32[88,560], index: 5, kind: output, shape index: {}]
  %s6 = sld [smem:[#allocation0]]
  $region30: #{_conv1x1_pad1_fused.1} parent=0
    _
  %s8 = ssub.s32 1, %s6
  %s9 = scalar_select 0, %s8, %s6
  // Predicated region
  $region2: #{_conv1x1_pad1_fused.1} parent=0 // pred_check
    _
  $region3: #{_conv1x1_pad1_fused.1} parent=0 // pred_check_branch
    %11 = sbr.rel (0) target = $region5
  $region4: #{_conv1x1_pad1_fused.1} parent=0 // pred_region
    _
  $region5: #{_conv1x1_pad1_fused.1} parent=0 // pred_fallthru
    _
  // Predicated region
  $region6: #{_conv1x1_pad1_fused.1} parent=0 // pred_check
    _
  $region7: #{_conv1x1_pad1_fused.1} parent=0 // pred_check_branch
    %13 = sbr.rel (0) target = $region9
  $region8: #{_conv1x1_pad1_fused.1} parent=0 // pred_region
    _
  $region9: #{_conv1x1_pad1_fused.1} parent=0 // pred_fallthru
    _
  // Predicated region
  $region10: #{_conv1x1_pad1_fused.1} parent=0 // pred_check
    _
  $region11: #{_conv1x1_pad1_fused.1} parent=0 // pred_check_branch
    %15 = sbr.rel (0) target = $region13
  $region12: #{_conv1x1_pad1_fused.1} parent=0 // pred_region
    _
  $region13: #{_conv1x1_pad1_fused.1} parent=0 // pred_fallthru
    _
  // Predicated region
  $region14: #{_conv1x1_pad1_fused.1} parent=0 // pred_check
    _
  $region15: #{_conv1x1_pad1_fused.1} parent=0 // pred_check_branch
    %17 = sbr.rel (0) target = $region17
  $region16: #{_conv1x1_pad1_fused.1} parent=0 // pred_region
    _
  $region17: #{_conv1x1_pad1_fused.1} parent=0 // pred_fallthru
    _
  // Predicated region
  $region18: #{_conv1x1_pad1_fused.1} parent=0 // pred_check
    _
  $region19: #{_conv1x1_pad1_fused.1} parent=0 // pred_check_branch
    %19 = sbr.rel (0) target = $region21
  $region20: #{_conv1x1_pad1_fused.1} parent=0 // pred_region
    _
  $region21: #{_conv1x1_pad1_fused.1} parent=0 // pred_fallthru
    _
  %v20 = vld [vmem:[%s0] sm:$0xff]
  %v21 = vld [vmem:[%s0 + $0x8] sm:$0xff]
  %v22 = vld [vmem:[%s0 + $0x10] sm:$0xff]
  %v23 = vld [vmem:[%s0 + $0x18] sm:$0xff]
  %v24 = vld [vmem:[%s0 + $0x20] sm:$0xff]
  %v25 = vld [vmem:[%s0 + $0x28] sm:$0xff]
  %v26 = vld [vmem:[%s0 + $0x30] sm:$0xff]
  %v27 = vld [vmem:[%s0 + $0x38] sm:$0xff]
  %v28 = vld [vmem:[%s0 + $0x40] sm:$0xff]
  %v29 = vld [vmem:[%s0 + $0x48] sm:$0xff]
  %v30 = vld [vmem:[%s0 + $0x50] sm:$0xff]
  %v31 = vld [vmem:[%s0 + $0x58] sm:$0xff]
  %v32 = vld [vmem:[%s0 + $0x60] sm:$0xff]
  %v33 = vld [vmem:[%s0 + $0x68] sm:$0xff]
  %v34 = vld [vmem:[%s0 + $0x70] sm:$0xff]
  %v35 = vld [vmem:[%s0 + $0x78] sm:$0xff]
  %v36 = vld [vmem:[%s0 + $0x80] sm:$0xff]
  %v37 = vld [vmem:[%s0 + $0x88] sm:$0xff]
  %v38 = vld [vmem:[%s0 + $0x90] sm:$0xff]
  %v39 = vld [vmem:[%s0 + $0x98] sm:$0xff]
  %v40 = vld [vmem:[%s0 + $0xa0] sm:$0xff]
  %v41 = vld [vmem:[%s0 + $0xa8] sm:$0xff]
  %v42 = vld [vmem:[%s0 + $0xb0] sm:$0xff]
  %v43 = vld [vmem:[%s0 + $0xb8] sm:$0xff]
  %v44 = vld [vmem:[%s0 + $0xc0] sm:$0xff]
  %v45 = vld [vmem:[%s0 + $0xc8] sm:$0xff]
  %v46 = vld [vmem:[%s0 + $0xd0] sm:$0xff]
  %v47 = vld [vmem:[%s0 + $0xd8] sm:$0xff]
  %v48 = vld [vmem:[%s0 + $0xe0] sm:$0xff]
  %v49 = vld [vmem:[%s0 + $0xe8] sm:$0xff]
  %v50 = vld [vmem:[%s0 + $0xf0] sm:$0xff]
  %v51 = vld [vmem:[%s0 + $0xf8] sm:$0xff]
  %v52 = vld [vmem:[%s0 + $0x100] sm:$0xff]
  %v53 = vld [vmem:[%s1] sm:$0xff]
  %v54 = vld [vmem:[%s1 + $0x8] sm:$0xff]
  %v55 = vld [vmem:[%s1 + $0x10] sm:$0xff]
  %v56 = vld [vmem:[%s1 + $0x18] sm:$0xff]
  %v57 = vld [vmem:[%s1 + $0x20] sm:$0xff]
  %v58 = vld [vmem:[%s1 + $0x28] sm:$0xff]
  %v59 = vld [vmem:[%s1 + $0x30] sm:$0xff]
  %v60 = vld [vmem:[%s1 + $0x38] sm:$0xff]
  %v61 = vld [vmem:[%s1 + $0x40] sm:$0xff]
  %v62 = vld [vmem:[%s1 + $0x48] sm:$0xff]
  %v63 = vld [vmem:[%s1 + $0x50] sm:$0xff]
  %v64 = vld [vmem:[%s1 + $0x58] sm:$0xff]
  %v65 = vld [vmem:[%s1 + $0x60] sm:$0xff]
  %v66 = vld [vmem:[%s1 + $0x68] sm:$0xff]
  %v67 = vld [vmem:[%s1 + $0x70] sm:$0xff]
  %v68 = vld [vmem:[%s1 + $0x78] sm:$0xff]
  %v69 = vld [vmem:[%s1 + $0x80] sm:$0xff]
  %v70 = vld [vmem:[%s1 + $0x88] sm:$0xff]
  %v71 = vld [vmem:[%s1 + $0x90] sm:$0xff]
  %v72 = vld [vmem:[%s1 + $0x98] sm:$0xff]
  %v73 = vld [vmem:[%s1 + $0xa0] sm:$0xff]
  %v74 = vld [vmem:[%s1 + $0xa8] sm:$0xff]
  %v75 = vld [vmem:[%s1 + $0xb0] sm:$0xff]
  %v76 = vld [vmem:[%s1 + $0xb8] sm:$0xff]
  %v77 = vld [vmem:[%s1 + $0xc0] sm:$0xff]
  %v78 = vld [vmem:[%s1 + $0xc8] sm:$0xff]
  %v79 = vld [vmem:[%s1 + $0xd0] sm:$0xff]
  %v80 = vld [vmem:[%s1 + $0xd8] sm:$0xff]
  %v81 = vld [vmem:[%s1 + $0xe0] sm:$0xff]
  %v82 = vld [vmem:[%s1 + $0xe8] sm:$0xff]
  %v83 = vld [vmem:[%s1 + $0xf0] sm:$0xff]
  %v84 = vld [vmem:[%s1 + $0xf8] sm:$0xff]
  %v85 = vld [vmem:[%s1 + $0x100] sm:$0xff]
  %v86 = vld [vmem:[%s1 + $0x108] sm:$0xff]
  %v87 = vld [vmem:[%s1 + $0x110] sm:$0xff]
  %v88 = vld [vmem:[%s1 + $0x118] sm:$0xff]
  %v89 = vld [vmem:[%s1 + $0x120] sm:$0xff]
  %v90 = vld [vmem:[%s1 + $0x128] sm:$0xff]
  %v91 = vld [vmem:[%s1 + $0x130] sm:$0xff]
  %v92 = vld [vmem:[%s1 + $0x138] sm:$0xff]
  %v93 = vld [vmem:[%s1 + $0x140] sm:$0xff]
  %v94 = vld [vmem:[%s1 + $0x148] sm:$0xff]
  %v95 = vld [vmem:[%s1 + $0x150] sm:$0xff]
  %v96 = vld [vmem:[%s1 + $0x158] sm:$0xff]
  %v97 = vld [vmem:[%s1 + $0x160] sm:$0xff]
  %v98 = vld [vmem:[%s1 + $0x168] sm:$0xff]
  %v99 = vld [vmem:[%s1 + $0x170] sm:$0xff]
  %v100 = vld [vmem:[%s1 + $0x178] sm:$0xff]
  %v101 = vld [vmem:[%s1 + $0x180] sm:$0xff]
  %v102 = vld [vmem:[%s1 + $0x188] sm:$0xff]
  %v103 = vld [vmem:[%s1 + $0x190] sm:$0xff]
  %v104 = vld [vmem:[%s1 + $0x198] sm:$0xff]
  %v105 = vld [vmem:[%s1 + $0x1a0] sm:$0xff]
  %v106 = vld [vmem:[%s1 + $0x1a8] sm:$0xff]
  %v107 = vld [vmem:[%s1 + $0x1b0] sm:$0xff]
  %v108 = vld [vmem:[%s1 + $0x1b8] sm:$0xff]
  %v109 = vld [vmem:[%s1 + $0x1c0] sm:$0xff]
  %v110 = vld [vmem:[%s1 + $0x1c8] sm:$0xff]
  %v111 = vld [vmem:[%s1 + $0x1d0] sm:$0xff]
  %v112 = vld [vmem:[%s1 + $0x1d8] sm:$0xff]
  %v113 = vld [vmem:[%s1 + $0x1e0] sm:$0xff]
  %v114 = vld [vmem:[%s1 + $0x1e8] sm:$0xff]
  %v115 = vld [vmem:[%s1 + $0x1f0] sm:$0xff]
  %v116 = vld [vmem:[%s1 + $0x1f8] sm:$0xff]
  %v117 = vld [vmem:[%s1 + $0x200] sm:$0xff]
  %v118 = vld [vmem:[%s1 + $0x208] sm:$0xff]
  %v119 = vld [vmem:[%s1 + $0x210] sm:$0xff]
  %v120 = vld [vmem:[%s1 + $0x218] sm:$0xff]
  %v121 = vld [vmem:[%s1 + $0x220] sm:$0xff]
  %v122 = vld [vmem:[%s1 + $0x228] sm:$0xff]
  %v123 = vld [vmem:[%s1 + $0x230] sm:$0xff]
  %v124 = vld [vmem:[%s1 + $0x238] sm:$0xff]
  %v125 = vld [vmem:[%s1 + $0x240] sm:$0xff]
  %v126 = vld [vmem:[%s1 + $0x248] sm:$0xff]
  %v127 = vld [vmem:[%s1 + $0x250] sm:$0xff]
  %v128 = vld [vmem:[%s1 + $0x258] sm:$0xff]
  %v129 = vld [vmem:[%s1 + $0x260] sm:$0xff]
  %v130 = vld [vmem:[%s1 + $0x268] sm:$0xff]
  %v131 = vld [vmem:[%s1 + $0x270] sm:$0xff]
  %v132 = vld [vmem:[%s1 + $0x278] sm:$0xff]
  %v133 = vld [vmem:[%s1 + $0x280] sm:$0xff]
  %v134 = vld [vmem:[%s1 + $0x288] sm:$0xff]
  %v135 = vld [vmem:[%s1 + $0x290] sm:$0xff]
  %v136 = vld [vmem:[%s1 + $0x298] sm:$0xff]
  %v137 = vld [vmem:[%s1 + $0x2a0] sm:$0xff]
  %v138 = vld [vmem:[%s1 + $0x2a8] sm:$0xff]
  %v139 = vld [vmem:[%s1 + $0x2b0] sm:$0xff]
  %v140 = vld [vmem:[%s1 + $0x2b8] sm:$0xff]
  %v141 = vld [vmem:[%s1 + $0x2c0] sm:$0xff]
  %v142 = vld [vmem:[%s1 + $0x2c8] sm:$0xff]
  %v143 = vld [vmem:[%s1 + $0x2d0] sm:$0xff]
  %v144 = vld [vmem:[%s1 + $0x2d8] sm:$0xff]
  %v145 = vld [vmem:[%s1 + $0x2e0] sm:$0xff]
  %v146 = vld [vmem:[%s1 + $0x2e8] sm:$0xff]
  %v147 = vld [vmem:[%s1 + $0x2f0] sm:$0xff]
  %v148 = vld [vmem:[%s1 + $0x2f8] sm:$0xff]
  %v149 = vld [vmem:[%s1 + $0x300] sm:$0xff]
  %v150 = vld [vmem:[%s1 + $0x308] sm:$0xff]
  %v151 = vld [vmem:[%s1 + $0x310] sm:$0xff]
  %v152 = vld [vmem:[%s1 + $0x318] sm:$0xff]
  %v153 = vld [vmem:[%s1 + $0x320] sm:$0xff]
  %v154 = vld [vmem:[%s1 + $0x328] sm:$0xff]
  %v155 = vld [vmem:[%s1 + $0x330] sm:$0xff]
  %v156 = vld [vmem:[%s1 + $0x338] sm:$0xff]
  %v157 = vld [vmem:[%s1 + $0x340] sm:$0xff]
  %v158 = vld [vmem:[%s1 + $0x348] sm:$0xff]
  %v159 = vld [vmem:[%s1 + $0x350] sm:$0xff]
  %v160 = vld [vmem:[%s1 + $0x358] sm:$0xff]
  %v161 = vld [vmem:[%s1 + $0x360] sm:$0xff]
  %v162 = vld [vmem:[%s1 + $0x368] sm:$0xff]
  %v163 = vld [vmem:[%s1 + $0x370] sm:$0xff]
  %v164 = vld [vmem:[%s1 + $0x378] sm:$0xff]
  %v165 = vld [vmem:[%s1 + $0x380] sm:$0xff]
  %v166 = vld [vmem:[%s1 + $0x388] sm:$0xff]
  %v167 = vld [vmem:[%s1 + $0x390] sm:$0xff]
  %v168 = vld [vmem:[%s1 + $0x398] sm:$0xff]
  %v169 = vld [vmem:[%s1 + $0x3a0] sm:$0xff]
  %v170 = vld [vmem:[%s1 + $0x3a8] sm:$0xff]
  %v171 = vld [vmem:[%s1 + $0x3b0] sm:$0xff]
  %v172 = vld [vmem:[%s1 + $0x3b8] sm:$0xff]
  %v173 = vld [vmem:[%s1 + $0x3c0] sm:$0xff]
  %v174 = vld [vmem:[%s1 + $0x3c8] sm:$0xff]
  %v175 = vld [vmem:[%s1 + $0x3d0] sm:$0xff]
  %v176 = vld [vmem:[%s1 + $0x3d8] sm:$0xff]
  %v177 = vld [vmem:[%s1 + $0x3e0] sm:$0xff]
  %v178 = vld [vmem:[%s1 + $0x3e8] sm:$0xff]
  %v179 = vld [vmem:[%s1 + $0x3f0] sm:$0xff]
  %v180 = vld [vmem:[%s1 + $0x3f8] sm:$0xff]
  %v181 = vld [vmem:[%s1 + $0x400] sm:$0xff]
  %v182 = vld [vmem:[%s1 + $0x408] sm:$0xff]
  %v183 = vld [vmem:[%s1 + $0x410] sm:$0xff]
  %v184 = vld [vmem:[%s1 + $0x418] sm:$0xff]
  %v185 = vld [vmem:[%s1 + $0x420] sm:$0xff]
  %v186 = vld [vmem:[%s1 + $0x428] sm:$0xff]
  %v187 = vld [vmem:[%s1 + $0x430] sm:$0xff]
  %v188 = vld [vmem:[%s1 + $0x438] sm:$0xff]
  %v189 = vld [vmem:[%s1 + $0x440] sm:$0xff]
  %v190 = vld [vmem:[%s1 + $0x448] sm:$0xff]
  %v191 = vld [vmem:[%s1 + $0x450] sm:$0xff]
  %v192 = vld [vmem:[%s1 + $0x458] sm:$0xff]
  %v193 = vld [vmem:[%s1 + $0x460] sm:$0xff]
  %v194 = vld [vmem:[%s1 + $0x468] sm:$0xff]
  %v195 = vld [vmem:[%s1 + $0x470] sm:$0xff]
  %v196 = vld [vmem:[%s1 + $0x478] sm:$0xff]
  %v197 = vld [vmem:[%s1 + $0x480] sm:$0xff]
  %v198 = vld [vmem:[%s1 + $0x488] sm:$0xff]
  %v199 = vld [vmem:[%s1 + $0x490] sm:$0xff]
  %v200 = vld [vmem:[%s1 + $0x498] sm:$0xff]
  %v201 = vld [vmem:[%s1 + $0x4a0] sm:$0xff]
  %v202 = vld [vmem:[%s1 + $0x4a8] sm:$0xff]
  %v203 = vld [vmem:[%s1 + $0x4b0] sm:$0xff]
  %v204 = vld [vmem:[%s1 + $0x4b8] sm:$0xff]
  %v205 = vld [vmem:[%s1 + $0x4c0] sm:$0xff]
  %v206 = vld [vmem:[%s1 + $0x4c8] sm:$0xff]
  %v207 = vld [vmem:[%s1 + $0x4d0] sm:$0xff]
  %v208 = vld [vmem:[%s1 + $0x4d8] sm:$0xff]
  %v209 = vld [vmem:[%s1 + $0x4e0] sm:$0xff]
  %v210 = vld [vmem:[%s1 + $0x4e8] sm:$0xff]
  %v211 = vld [vmem:[%s1 + $0x4f0] sm:$0xff]
  %v212 = vld [vmem:[%s1 + $0x4f8] sm:$0xff]
  %v213 = vld [vmem:[%s1 + $0x500] sm:$0xff]
  %v214 = vld [vmem:[%s1 + $0x508] sm:$0xff]
  %v215 = vld [vmem:[%s1 + $0x510] sm:$0xff]
  %v216 = vld [vmem:[%s1 + $0x518] sm:$0xff]
  %v217 = vld [vmem:[%s1 + $0x520] sm:$0xff]
  %v218 = vld [vmem:[%s1 + $0x528] sm:$0xff]
  %v219 = vld [vmem:[%s1 + $0x530] sm:$0xff]
  %v220 = vld [vmem:[%s1 + $0x538] sm:$0xff]
  %v221 = vld [vmem:[%s1 + $0x540] sm:$0xff]
  %v222 = vld [vmem:[%s1 + $0x548] sm:$0xff]
  %v223 = vld [vmem:[%s1 + $0x550] sm:$0xff]
  %v224 = vld [vmem:[%s1 + $0x558] sm:$0xff]
  %v225 = vld [vmem:[%s1 + $0x560] sm:$0xff]
  %v226 = vld [vmem:[%s1 + $0x568] sm:$0xff]
  %v227 = vld [vmem:[%s1 + $0x570] sm:$0xff]
  %v228 = vld [vmem:[%s1 + $0x578] sm:$0xff]
  %v229 = vld [vmem:[%s1 + $0x580] sm:$0xff]
  %v230 = vld [vmem:[%s1 + $0x588] sm:$0xff]
  %v231 = vld [vmem:[%s1 + $0x590] sm:$0xff]
  %v232 = vld [vmem:[%s1 + $0x598] sm:$0xff]
  %v233 = vld [vmem:[%s2] sm:$0x1f]
  %v235 = vlaneseq
  %v236 = vshrl.u32 %v235, 7
  %v237 = vsub.s32 0, %v236
  %v238 = vrot.slane %v233, %v237
  %v239 = vlaneseq
  %v240 = vshrl.u32 %v239, 7
  %v241 = vsub.s32 1, %v240
  %v242 = vrot.slane %v233, %v241
  %v243 = vlaneseq
  %v244 = vshrl.u32 %v243, 7
  %v245 = vsub.s32 2, %v244
  %v246 = vrot.slane %v233, %v245
  %v247 = vlaneseq
  %v248 = vshrl.u32 %v247, 7
  %v249 = vsub.s32 3, %v248
  %v250 = vrot.slane %v233, %v249
  %v251 = vlaneseq
  %v252 = vshrl.u32 %v251, 7
  %v253 = vsub.s32 4, %v252
  %v254 = vrot.slane %v233, %v253
  %vm260 = vcmask 261120
  %v262 = vsel %vm260, %v22, 0
  %v265 = vsel %vm260, %v25, 0
  %v268 = vsel %vm260, %v28, 0
  %v271 = vsel %vm260, %v31, 0
  %v274 = vsel %vm260, %v34, 0
  %v277 = vsel %vm260, %v37, 0
  %v280 = vsel %vm260, %v40, 0
  %v283 = vsel %vm260, %v43, 0
  %v286 = vsel %vm260, %v46, 0
  %v289 = vsel %vm260, %v49, 0
  %v292 = vsel %vm260, %v52, 0
  %294 = vmatprep.subr.mxu0 %v54
  %295 = vmatpush1.msra.mxu0 %v53
  %296 = vmatprep.subr.mxu0 %v59
  %297 = vmatpush1.msra.mxu0 %v58
  %298 = vmatprep.subr.mxu0 %v64
  %299 = vmatpush1.msra.mxu0 %v63
  %300 = vmatprep.subr.mxu0 %v69
  %301 = vmatpush1.msra.mxu0 %v68
  %302 = vmatprep.subr.mxu0 %v74
  %303 = vmatpush1.msra.mxu0 %v73
  %304 = vmatprep.subr.mxu0 %v79
  %305 = vmatpush1.msra.mxu0 %v78
  %306 = vmatprep.subr.mxu0 %v84
  %307 = vmatpush1.msra.mxu0 %v83
  %308 = vmatprep.subr.mxu0 %v89
  %309 = vmatpush1.msra.mxu0 %v88
  %310 = vmatprep.subr.mxu0 %v94
  %311 = vmatpush1.msra.mxu0 %v93
  %312 = vmatprep.subr.mxu0 %v99
  %313 = vmatpush1.msra.mxu0 %v98
  %314 = vmatprep.subr.mxu0 %v104
  %315 = vmatpush1.msra.mxu0 %v103
  %316 = vmatprep.subr.mxu0 %v109
  %317 = vmatpush1.msra.mxu0 %v108
  %318 = vmatprep.subr.mxu0 %v114
  %319 = vmatpush1.msra.mxu0 %v113
  %320 = vmatprep.subr.mxu0 %v119
  %321 = vmatpush1.msra.mxu0 %v118
  %322 = vmatprep.subr.mxu0 %v124
  %323 = vmatpush1.msra.mxu0 %v123
  %324 = vmatprep.subr.mxu0 %v129
  %325 = vmatpush1.msra.mxu0 %v128
  %326 = vmatprep.subr.mxu0 %v134
  %327 = vmatpush1.msra.mxu0 %v133
  %328 = vmatprep.subr.mxu0 %v139
  %329 = vmatpush1.msra.mxu0 %v138
  %330 = vmatprep.subr.mxu0 %v144
  %331 = vmatpush1.msra.mxu0 %v143
  %332 = vmatprep.subr.mxu0 %v149
  %333 = vmatpush1.msra.mxu0 %v148
  %334 = vmatprep.subr.mxu0 %v154
  %335 = vmatpush1.msra.mxu0 %v153
  %336 = vmatprep.subr.mxu0 %v159
  %337 = vmatpush1.msra.mxu0 %v158
  %338 = vmatprep.subr.mxu0 %v164
  %339 = vmatpush1.msra.mxu0 %v163
  %340 = vmatprep.subr.mxu0 %v169
  %341 = vmatpush1.msra.mxu0 %v168
  %342 = vmatprep.subr.mxu0 %v174
  %343 = vmatpush1.msra.mxu0 %v173
  %344 = vmatprep.subr.mxu0 %v179
  %345 = vmatpush1.msra.mxu0 %v178
  %346 = vmatprep.subr.mxu0 %v184
  %347 = vmatpush1.msra.mxu0 %v183
  %348 = vmatprep.subr.mxu0 %v189
  %349 = vmatpush1.msra.mxu0 %v188
  %350 = vmatprep.subr.mxu0 %v194
  %351 = vmatpush1.msra.mxu0 %v193
  %352 = vmatprep.subr.mxu0 %v199
  %353 = vmatpush1.msra.mxu0 %v198
  %354 = vmatprep.subr.mxu0 %v204
  %355 = vmatpush1.msra.mxu0 %v203
  %356 = vmatprep.subr.mxu0 %v209
  %357 = vmatpush1.msra.mxu0 %v208
  %358 = vmatprep.mubr.f32.mxu0 %v21
  %359 = vmatmul.mubr.f32.gmra.mrb[0].mxu0 %v20
  %v360 = vpop.f32.mrb[0].mxu0
  %v361 = vadd.f32 %v238, %v360
  %v362 = vpop.f32.mrb[0].mxu0
  %v363 = vadd.f32 %v242, %v362
  %364 = vmatprep.mubr.f32.mxu0 %v24
  %365 = vmatmul.mubr.f32.gmra.mrb[0].mxu0 %v23
  %v366 = vpop.f32.mrb[0].mxu0
  %v367 = vadd.f32 %v238, %v366
  %v368 = vpop.f32.mrb[0].mxu0
  %v369 = vadd.f32 %v242, %v368
  %370 = vmatprep.mubr.f32.mxu0 %v27
  %371 = vmatmul.mubr.f32.gmra.mrb[0].mxu0 %v26
  %v372 = vpop.f32.mrb[0].mxu0
  %v373 = vadd.f32 %v238, %v372
  %v374 = vpop.f32.mrb[0].mxu0
  %v375 = vadd.f32 %v242, %v374
  %376 = vmatprep.mubr.f32.mxu0 %v30
  %377 = vmatmul.mubr.f32.gmra.mrb[0].mxu0 %v29
  %v378 = vpop.f32.mrb[0].mxu0
  %v379 = vadd.f32 %v238, %v378
  %v380 = vpop.f32.mrb[0].mxu0
  %v381 = vadd.f32 %v242, %v380
  %382 = vmatprep.mubr.f32.mxu0 %v33
  %383 = vmatmul.mubr.f32.gmra.mrb[0].mxu0 %v32
  %v384 = vpop.f32.mrb[0].mxu0
  %v385 = vadd.f32 %v238, %v384
  %v386 = vpop.f32.mrb[0].mxu0
  %v387 = vadd.f32 %v242, %v386
  %388 = vmatprep.mubr.f32.mxu0 %v36
  %389 = vmatmul.mubr.f32.gmra.mrb[0].mxu0 %v35
  %v390 = vpop.f32.mrb[0].mxu0
  %v391 = vadd.f32 %v238, %v390
  %v392 = vpop.f32.mrb[0].mxu0
  %v393 = vadd.f32 %v242, %v392
  %394 = vmatprep.mubr.f32.mxu0 %v39
  %395 = vmatmul.mubr.f32.gmra.mrb[0].mxu0 %v38
  %v396 = vpop.f32.mrb[0].mxu0
  %v397 = vadd.f32 %v238, %v396
  %v398 = vpop.f32.mrb[0].mxu0
  %v399 = vadd.f32 %v242, %v398
  %400 = vmatprep.mubr.f32.mxu0 %v42
  %401 = vmatmul.mubr.f32.gmra.mrb[0].mxu0 %v41
  %v402 = vpop.f32.mrb[0].mxu0
  %v403 = vadd.f32 %v238, %v402
  %v404 = vpop.f32.mrb[0].mxu0
  %v405 = vadd.f32 %v242, %v404
  %406 = vmatprep.mubr.f32.mxu0 %v45
  %407 = vmatmul.mubr.f32.gmra.mrb[0].mxu0 %v44
  %v408 = vpop.f32.mrb[0].mxu0
  %v409 = vadd.f32 %v238, %v408
  %v410 = vpop.f32.mrb[0].mxu0
  %v411 = vadd.f32 %v242, %v410
  %412 = vmatprep.mubr.f32.mxu0 %v48
  %413 = vmatmul.mubr.f32.gmra.mrb[0].mxu0 %v47
  %v414 = vpop.f32.mrb[0].mxu0
  %v415 = vadd.f32 %v238, %v414
  %v416 = vpop.f32.mrb[0].mxu0
  %v417 = vadd.f32 %v242, %v416
  %418 = vmatprep.mubr.f32.mxu0 %v51
  %419 = vmatmul.mubr.f32.gmra.mrb[0].mxu0 %v50
  %v420 = vpop.f32.mrb[0].mxu0
  %v421 = vadd.f32 %v238, %v420
  %v422 = vpop.f32.mrb[0].mxu0
  %v423 = vadd.f32 %v242, %v422
  %424 = vdwg.mxu0
  %425 = vmatprep.subr.mxu0 %v214
  %426 = vmatpush1.msra.mxu0 %v213
  %427 = vmatprep.subr.mxu0 %v219
  %428 = vmatpush1.msra.mxu0 %v218
  %429 = vmatprep.subr.mxu0 %v224
  %430 = vmatpush1.msra.mxu0 %v223
  %431 = vmatprep.subr.mxu0 %v229
  %432 = vmatpush1.msra.mxu0 %v228
  %433 = vmatprep.subr.mxu0 0.0
  %434 = vmatpush1.msra.mxu0 0.0
  %435 = vmatprep.subr.mxu0 0.0
  %436 = vmatpush1.msra.mxu0 0.0
  %437 = vmatprep.subr.mxu0 0.0
  %438 = vmatpush1.msra.mxu0 0.0
  %439 = vmatprep.subr.mxu0 0.0
  %440 = vmatpush1.msra.mxu0 0.0
  %441 = vmatprep.subr.mxu0 0.0
  %442 = vmatpush1.msra.mxu0 0.0
  %443 = vmatprep.subr.mxu0 0.0
  %444 = vmatpush1.msra.mxu0 0.0
  %445 = vmatprep.subr.mxu0 0.0
  %446 = vmatpush1.msra.mxu0 0.0
  %447 = vmatprep.subr.mxu0 0.0
  %448 = vmatpush1.msra.mxu0 0.0
  %449 = vmatprep.subr.mxu0 0.0
  %450 = vmatpush1.msra.mxu0 0.0
  %451 = vmatprep.subr.mxu0 0.0
  %452 = vmatpush1.msra.mxu0 0.0
  %453 = vmatprep.subr.mxu0 0.0
  %454 = vmatpush1.msra.mxu0 0.0
  %455 = vmatprep.subr.mxu0 0.0
  %456 = vmatpush1.msra.mxu0 0.0
  %457 = vmatprep.subr.mxu0 0.0
  %458 = vmatpush1.msra.mxu0 0.0
  %459 = vmatprep.subr.mxu0 0.0
  %460 = vmatpush1.msra.mxu0 0.0
  %461 = vmatprep.subr.mxu0 0.0
  %462 = vmatpush1.msra.mxu0 0.0
  %463 = vmatprep.subr.mxu0 0.0
  %464 = vmatpush1.msra.mxu0 0.0
  %465 = vmatprep.subr.mxu0 0.0
  %466 = vmatpush1.msra.mxu0 0.0
  %467 = vmatprep.subr.mxu0 0.0
  %468 = vmatpush1.msra.mxu0 0.0
  %469 = vmatprep.subr.mxu0 0.0
  %470 = vmatpush1.msra.mxu0 0.0
  %471 = vmatprep.subr.mxu0 0.0
  %472 = vmatpush1.msra.mxu0 0.0
  %473 = vmatprep.subr.mxu0 0.0
  %474 = vmatpush1.msra.mxu0 0.0
  %475 = vmatprep.subr.mxu0 0.0
  %476 = vmatpush1.msra.mxu0 0.0
  %477 = vmatprep.subr.mxu0 0.0
  %478 = vmatpush1.msra.mxu0 0.0
  %479 = vmatprep.subr.mxu0 0.0
  %480 = vmatpush1.msra.mxu0 0.0
  %481 = vmatprep.subr.mxu0 0.0
  %482 = vmatpush1.msra.mxu0 0.0
  %483 = vmatprep.subr.mxu0 0.0
  %484 = vmatpush1.msra.mxu0 0.0
  %485 = vmatprep.subr.mxu0 0.0
  %486 = vmatpush1.msra.mxu0 0.0
  %487 = vmatprep.subr.mxu0 0.0
  %488 = vmatpush1.msra.mxu0 0.0
  %489 = vmatprep.mubr.f32.mxu0 0.0
  %490 = vmatmul.mubr.f32.gmra.mrb[0].mxu0 %v262
  %v491 = vpop.f32.mrb[0].mxu0
  %v492 = vadd.f32 %v361, %v491
  %v493 = vpop.f32.mrb[0].mxu0
  %v494 = vadd.f32 %v363, %v493
  %495 = vmatprep.mubr.f32.mxu0 0.0
  %496 = vmatmul.mubr.f32.gmra.mrb[0].mxu0 %v265
  %v497 = vpop.f32.mrb[0].mxu0
  %v498 = vadd.f32 %v367, %v497
  %v499 = vpop.f32.mrb[0].mxu0
  %v500 = vadd.f32 %v369, %v499
  %501 = vmatprep.mubr.f32.mxu0 0.0
  %502 = vmatmul.mubr.f32.gmra.mrb[0].mxu0 %v268
  %v503 = vpop.f32.mrb[0].mxu0
  %v504 = vadd.f32 %v373, %v503
  %v505 = vpop.f32.mrb[0].mxu0
  %v506 = vadd.f32 %v375, %v505
  %507 = vmatprep.mubr.f32.mxu0 0.0
  %508 = vmatmul.mubr.f32.gmra.mrb[0].mxu0 %v271
  %v509 = vpop.f32.mrb[0].mxu0
  %v510 = vadd.f32 %v379, %v509
  %v511 = vpop.f32.mrb[0].mxu0
  %v512 = vadd.f32 %v381, %v511
  %513 = vmatprep.mubr.f32.mxu0 0.0
  %514 = vmatmul.mubr.f32.gmra.mrb[0].mxu0 %v274
  %v515 = vpop.f32.mrb[0].mxu0
  %v516 = vadd.f32 %v385, %v515
  %v517 = vpop.f32.mrb[0].mxu0
  %v518 = vadd.f32 %v387, %v517
  %519 = vmatprep.mubr.f32.mxu0 0.0
  %520 = vmatmul.mubr.f32.gmra.mrb[0].mxu0 %v277
  %v521 = vpop.f32.mrb[0].mxu0
  %v522 = vadd.f32 %v391, %v521
  %v523 = vpop.f32.mrb[0].mxu0
  %v524 = vadd.f32 %v393, %v523
  %525 = vmatprep.mubr.f32.mxu0 0.0
  %526 = vmatmul.mubr.f32.gmra.mrb[0].mxu0 %v280
  %v527 = vpop.f32.mrb[0].mxu0
  %v528 = vadd.f32 %v397, %v527
  %v529 = vpop.f32.mrb[0].mxu0
  %v530 = vadd.f32 %v399, %v529
  %531 = vmatprep.mubr.f32.mxu0 0.0
  %532 = vmatmul.mubr.f32.gmra.mrb[0].mxu0 %v283
  %v533 = vpop.f32.mrb[0].mxu0
  %v534 = vadd.f32 %v403, %v533
  %v535 = vpop.f32.mrb[0].mxu0
  %v536 = vadd.f32 %v405, %v535
  %537 = vmatprep.mubr.f32.mxu0 0.0
  %538 = vmatmul.mubr.f32.gmra.mrb[0].mxu0 %v286
  %v539 = vpop.f32.mrb[0].mxu0
  %v540 = vadd.f32 %v409, %v539
  %v541 = vpop.f32.mrb[0].mxu0
  %v542 = vadd.f32 %v411, %v541
  %543 = vmatprep.mubr.f32.mxu0 0.0
  %544 = vmatmul.mubr.f32.gmra.mrb[0].mxu0 %v289
  %v545 = vpop.f32.mrb[0].mxu0
  %v546 = vadd.f32 %v415, %v545
  %v547 = vpop.f32.mrb[0].mxu0
  %v548 = vadd.f32 %v417, %v547
  %549 = vmatprep.mubr.f32.mxu0 0.0
  %550 = vmatmul.mubr.f32.gmra.mrb[0].mxu0 %v292
  %v551 = vpop.f32.mrb[0].mxu0
  %v552 = vadd.f32 %v421, %v551
  %v553 = vpop.f32.mrb[0].mxu0
  %v554 = vadd.f32 %v423, %v553
  %555 = vdwg.mxu0
  %556 = vmatprep.subr.mxu0 %v56
  %557 = vmatpush1.msra.mxu0 %v55
  %558 = vmatprep.subr.mxu0 %v61
  %559 = vmatpush1.msra.mxu0 %v60
  %560 = vmatprep.subr.mxu0 %v66
  %561 = vmatpush1.msra.mxu0 %v65
  %562 = vmatprep.subr.mxu0 %v71
  %563 = vmatpush1.msra.mxu0 %v70
  %564 = vmatprep.subr.mxu0 %v76
  %565 = vmatpush1.msra.mxu0 %v75
  %566 = vmatprep.subr.mxu0 %v81
  %567 = vmatpush1.msra.mxu0 %v80
  %568 = vmatprep.subr.mxu0 %v86
  %569 = vmatpush1.msra.mxu0 %v85
  %570 = vmatprep.subr.mxu0 %v91
  %571 = vmatpush1.msra.mxu0 %v90
  %572 = vmatprep.subr.mxu0 %v96
  %573 = vmatpush1.msra.mxu0 %v95
  %574 = vmatprep.subr.mxu0 %v101
  %575 = vmatpush1.msra.mxu0 %v100
  %576 = vmatprep.subr.mxu0 %v106
  %577 = vmatpush1.msra.mxu0 %v105
  %578 = vmatprep.subr.mxu0 %v111
  %579 = vmatpush1.msra.mxu0 %v110
  %580 = vmatprep.subr.mxu0 %v116
  %581 = vmatpush1.msra.mxu0 %v115
  %582 = vmatprep.subr.mxu0 %v121
  %583 = vmatpush1.msra.mxu0 %v120
  %584 = vmatprep.subr.mxu0 %v126
  %585 = vmatpush1.msra.mxu0 %v125
  %586 = vmatprep.subr.mxu0 %v131
  %587 = vmatpush1.msra.mxu0 %v130
  %588 = vmatprep.subr.mxu0 %v136
  %589 = vmatpush1.msra.mxu0 %v135
  %590 = vmatprep.subr.mxu0 %v141
  %591 = vmatpush1.msra.mxu0 %v140
  %592 = vmatprep.subr.mxu0 %v146
  %593 = vmatpush1.msra.mxu0 %v145
  %594 = vmatprep.subr.mxu0 %v151
  %595 = vmatpush1.msra.mxu0 %v150
  %596 = vmatprep.subr.mxu0 %v156
  %597 = vmatpush1.msra.mxu0 %v155
  %598 = vmatprep.subr.mxu0 %v161
  %599 = vmatpush1.msra.mxu0 %v160
  %600 = vmatprep.subr.mxu0 %v166
  %601 = vmatpush1.msra.mxu0 %v165
  %602 = vmatprep.subr.mxu0 %v171
  %603 = vmatpush1.msra.mxu0 %v170
  %604 = vmatprep.subr.mxu0 %v176
  %605 = vmatpush1.msra.mxu0 %v175
  %606 = vmatprep.subr.mxu0 %v181
  %607 = vmatpush1.msra.mxu0 %v180
  %608 = vmatprep.subr.mxu0 %v186
  %609 = vmatpush1.msra.mxu0 %v185
  %610 = vmatprep.subr.mxu0 %v191
  %611 = vmatpush1.msra.mxu0 %v190
  %612 = vmatprep.subr.mxu0 %v196
  %613 = vmatpush1.msra.mxu0 %v195
  %614 = vmatprep.subr.mxu0 %v201
  %615 = vmatpush1.msra.mxu0 %v200
  %616 = vmatprep.subr.mxu0 %v206
  %617 = vmatpush1.msra.mxu0 %v205
  %618 = vmatprep.subr.mxu0 %v211
  %619 = vmatpush1.msra.mxu0 %v210
  %620 = vmatprep.mubr.f32.mxu0 %v21
  %621 = vmatmul.mubr.f32.gmra.mrb[0].mxu0 %v20
  %v622 = vpop.f32.mrb[0].mxu0
  %v623 = vadd.f32 %v246, %v622
  %v624 = vpop.f32.mrb[0].mxu0
  %v625 = vadd.f32 %v250, %v624
  %626 = vmatprep.mubr.f32.mxu0 %v24
  %627 = vmatmul.mubr.f32.gmra.mrb[0].mxu0 %v23
  %v628 = vpop.f32.mrb[0].mxu0
  %v629 = vadd.f32 %v246, %v628
  %v630 = vpop.f32.mrb[0].mxu0
  %v631 = vadd.f32 %v250, %v630
  %632 = vmatprep.mubr.f32.mxu0 %v27
  %633 = vmatmul.mubr.f32.gmra.mrb[0].mxu0 %v26
  %v634 = vpop.f32.mrb[0].mxu0
  %v635 = vadd.f32 %v246, %v634
  %v636 = vpop.f32.mrb[0].mxu0
  %v637 = vadd.f32 %v250, %v636
  %638 = vmatprep.mubr.f32.mxu0 %v30
  %639 = vmatmul.mubr.f32.gmra.mrb[0].mxu0 %v29
  %v640 = vpop.f32.mrb[0].mxu0
  %v641 = vadd.f32 %v246, %v640
  %v642 = vpop.f32.mrb[0].mxu0
  %v643 = vadd.f32 %v250, %v642
  %644 = vmatprep.mubr.f32.mxu0 %v33
  %645 = vmatmul.mubr.f32.gmra.mrb[0].mxu0 %v32
  %v646 = vpop.f32.mrb[0].mxu0
  %v647 = vadd.f32 %v246, %v646
  %v648 = vpop.f32.mrb[0].mxu0
  %v649 = vadd.f32 %v250, %v648
  %650 = vmatprep.mubr.f32.mxu0 %v36
  %651 = vmatmul.mubr.f32.gmra.mrb[0].mxu0 %v35
  %v652 = vpop.f32.mrb[0].mxu0
  %v653 = vadd.f32 %v246, %v652
  %v654 = vpop.f32.mrb[0].mxu0
  %v655 = vadd.f32 %v250, %v654
  %656 = vmatprep.mubr.f32.mxu0 %v39
  %657 = vmatmul.mubr.f32.gmra.mrb[0].mxu0 %v38
  %v658 = vpop.f32.mrb[0].mxu0
  %v659 = vadd.f32 %v246, %v658
  %v660 = vpop.f32.mrb[0].mxu0
  %v661 = vadd.f32 %v250, %v660
  %662 = vmatprep.mubr.f32.mxu0 %v42
  %663 = vmatmul.mubr.f32.gmra.mrb[0].mxu0 %v41
  %v664 = vpop.f32.mrb[0].mxu0
  %v665 = vadd.f32 %v246, %v664
  %v666 = vpop.f32.mrb[0].mxu0
  %v667 = vadd.f32 %v250, %v666
  %668 = vmatprep.mubr.f32.mxu0 %v45
  %669 = vmatmul.mubr.f32.gmra.mrb[0].mxu0 %v44
  %v670 = vpop.f32.mrb[0].mxu0
  %v671 = vadd.f32 %v246, %v670
  %v672 = vpop.f32.mrb[0].mxu0
  %v673 = vadd.f32 %v250, %v672
  %674 = vmatprep.mubr.f32.mxu0 %v48
  %675 = vmatmul.mubr.f32.gmra.mrb[0].mxu0 %v47
  %v676 = vpop.f32.mrb[0].mxu0
  %v677 = vadd.f32 %v246, %v676
  %v678 = vpop.f32.mrb[0].mxu0
  %v679 = vadd.f32 %v250, %v678
  %680 = vmatprep.mubr.f32.mxu0 %v51
  %681 = vmatmul.mubr.f32.gmra.mrb[0].mxu0 %v50
  %v682 = vpop.f32.mrb[0].mxu0
  %v683 = vadd.f32 %v246, %v682
  %v684 = vpop.f32.mrb[0].mxu0
  %v685 = vadd.f32 %v250, %v684
  %686 = vdwg.mxu0
  %687 = vmatprep.subr.mxu0 %v216
  %688 = vmatpush1.msra.mxu0 %v215
  %689 = vmatprep.subr.mxu0 %v221
  %690 = vmatpush1.msra.mxu0 %v220
  %691 = vmatprep.subr.mxu0 %v226
  %692 = vmatpush1.msra.mxu0 %v225
  %693 = vmatprep.subr.mxu0 %v231
  %694 = vmatpush1.msra.mxu0 %v230
  %695 = vmatprep.subr.mxu0 0.0
  %696 = vmatpush1.msra.mxu0 0.0
  %697 = vmatprep.subr.mxu0 0.0
  %698 = vmatpush1.msra.mxu0 0.0
  %699 = vmatprep.subr.mxu0 0.0
  %700 = vmatpush1.msra.mxu0 0.0
  %701 = vmatprep.subr.mxu0 0.0
  %702 = vmatpush1.msra.mxu0 0.0
  %703 = vmatprep.subr.mxu0 0.0
  %704 = vmatpush1.msra.mxu0 0.0
  %705 = vmatprep.subr.mxu0 0.0
  %706 = vmatpush1.msra.mxu0 0.0
  %707 = vmatprep.subr.mxu0 0.0
  %708 = vmatpush1.msra.mxu0 0.0
  %709 = vmatprep.subr.mxu0 0.0
  %710 = vmatpush1.msra.mxu0 0.0
  %711 = vmatprep.subr.mxu0 0.0
  %712 = vmatpush1.msra.mxu0 0.0
  %713 = vmatprep.subr.mxu0 0.0
  %714 = vmatpush1.msra.mxu0 0.0
  %715 = vmatprep.subr.mxu0 0.0
  %716 = vmatpush1.msra.mxu0 0.0
  %717 = vmatprep.subr.mxu0 0.0
  %718 = vmatpush1.msra.mxu0 0.0
  %719 = vmatprep.subr.mxu0 0.0
  %720 = vmatpush1.msra.mxu0 0.0
  %721 = vmatprep.subr.mxu0 0.0
  %722 = vmatpush1.msra.mxu0 0.0
  %723 = vmatprep.subr.mxu0 0.0
  %724 = vmatpush1.msra.mxu0 0.0
  %725 = vmatprep.subr.mxu0 0.0
  %726 = vmatpush1.msra.mxu0 0.0
  %727 = vmatprep.subr.mxu0 0.0
  %728 = vmatpush1.msra.mxu0 0.0
  %729 = vmatprep.subr.mxu0 0.0
  %730 = vmatpush1.msra.mxu0 0.0
  %731 = vmatprep.subr.mxu0 0.0
  %732 = vmatpush1.msra.mxu0 0.0
  %733 = vmatprep.subr.mxu0 0.0
  %734 = vmatpush1.msra.mxu0 0.0
  %735 = vmatprep.subr.mxu0 0.0
  %736 = vmatpush1.msra.mxu0 0.0
  %737 = vmatprep.subr.mxu0 0.0
  %738 = vmatpush1.msra.mxu0 0.0
  %739 = vmatprep.subr.mxu0 0.0
  %740 = vmatpush1.msra.mxu0 0.0
  %741 = vmatprep.subr.mxu0 0.0
  %742 = vmatpush1.msra.mxu0 0.0
  %743 = vmatprep.subr.mxu0 0.0
  %744 = vmatpush1.msra.mxu0 0.0
  %745 = vmatprep.subr.mxu0 0.0
  %746 = vmatpush1.msra.mxu0 0.0
  %747 = vmatprep.subr.mxu0 0.0
  %748 = vmatpush1.msra.mxu0 0.0
  %749 = vmatprep.subr.mxu0 0.0
  %750 = vmatpush1.msra.mxu0 0.0
  %751 = vmatprep.mubr.f32.mxu0 0.0
  %752 = vmatmul.mubr.f32.gmra.mrb[0].mxu0 %v262
  %v753 = vpop.f32.mrb[0].mxu0
  %v754 = vadd.f32 %v623, %v753
  %v755 = vpop.f32.mrb[0].mxu0
  %v756 = vadd.f32 %v625, %v755
  %757 = vmatprep.mubr.f32.mxu0 0.0
  %758 = vmatmul.mubr.f32.gmra.mrb[0].mxu0 %v265
  %v759 = vpop.f32.mrb[0].mxu0
  %v760 = vadd.f32 %v629, %v759
  %v761 = vpop.f32.mrb[0].mxu0
  %v762 = vadd.f32 %v631, %v761
  %763 = vmatprep.mubr.f32.mxu0 0.0
  %764 = vmatmul.mubr.f32.gmra.mrb[0].mxu0 %v268
  %v765 = vpop.f32.mrb[0].mxu0
  %v766 = vadd.f32 %v635, %v765
  %v767 = vpop.f32.mrb[0].mxu0
  %v768 = vadd.f32 %v637, %v767
  %769 = vmatprep.mubr.f32.mxu0 0.0
  %770 = vmatmul.mubr.f32.gmra.mrb[0].mxu0 %v271
  %v771 = vpop.f32.mrb[0].mxu0
  %v772 = vadd.f32 %v641, %v771
  %v773 = vpop.f32.mrb[0].mxu0
  %v774 = vadd.f32 %v643, %v773
  %775 = vmatprep.mubr.f32.mxu0 0.0
  %776 = vmatmul.mubr.f32.gmra.mrb[0].mxu0 %v274
  %v777 = vpop.f32.mrb[0].mxu0
  %v778 = vadd.f32 %v647, %v777
  %v779 = vpop.f32.mrb[0].mxu0
  %v780 = vadd.f32 %v649, %v779
  %781 = vmatprep.mubr.f32.mxu0 0.0
  %782 = vmatmul.mubr.f32.gmra.mrb[0].mxu0 %v277
  %v783 = vpop.f32.mrb[0].mxu0
  %v784 = vadd.f32 %v653, %v783
  %v785 = vpop.f32.mrb[0].mxu0
  %v786 = vadd.f32 %v655, %v785
  %787 = vmatprep.mubr.f32.mxu0 0.0
  %788 = vmatmul.mubr.f32.gmra.mrb[0].mxu0 %v280
  %v789 = vpop.f32.mrb[0].mxu0
  %v790 = vadd.f32 %v659, %v789
  %v791 = vpop.f32.mrb[0].mxu0
  %v792 = vadd.f32 %v661, %v791
  %793 = vmatprep.mubr.f32.mxu0 0.0
  %794 = vmatmul.mubr.f32.gmra.mrb[0].mxu0 %v283
  %v795 = vpop.f32.mrb[0].mxu0
  %v796 = vadd.f32 %v665, %v795
  %v797 = vpop.f32.mrb[0].mxu0
  %v798 = vadd.f32 %v667, %v797
  %799 = vmatprep.mubr.f32.mxu0 0.0
  %800 = vmatmul.mubr.f32.gmra.mrb[0].mxu0 %v286
  %v801 = vpop.f32.mrb[0].mxu0
  %v802 = vadd.f32 %v671, %v801
  %v803 = vpop.f32.mrb[0].mxu0
  %v804 = vadd.f32 %v673, %v803
  %805 = vmatprep.mubr.f32.mxu0 0.0
  %806 = vmatmul.mubr.f32.gmra.mrb[0].mxu0 %v289
  %v807 = vpop.f32.mrb[0].mxu0
  %v808 = vadd.f32 %v677, %v807
  %v809 = vpop.f32.mrb[0].mxu0
  %v810 = vadd.f32 %v679, %v809
  %811 = vmatprep.mubr.f32.mxu0 0.0
  %812 = vmatmul.mubr.f32.gmra.mrb[0].mxu0 %v292
  %v813 = vpop.f32.mrb[0].mxu0
  %v814 = vadd.f32 %v683, %v813
  %v815 = vpop.f32.mrb[0].mxu0
  %v816 = vadd.f32 %v685, %v815
  %817 = vdwg.mxu0
  %818 = vmatprep.subr.mxu0 0.0
  %819 = vmatpush1.msra.mxu0 %v57
  %820 = vmatprep.subr.mxu0 0.0
  %821 = vmatpush1.msra.mxu0 %v62
  %822 = vmatprep.subr.mxu0 0.0
  %823 = vmatpush1.msra.mxu0 %v67
  %824 = vmatprep.subr.mxu0 0.0
  %825 = vmatpush1.msra.mxu0 %v72
  %826 = vmatprep.subr.mxu0 0.0
  %827 = vmatpush1.msra.mxu0 %v77
  %828 = vmatprep.subr.mxu0 0.0
  %829 = vmatpush1.msra.mxu0 %v82
  %830 = vmatprep.subr.mxu0 0.0
  %831 = vmatpush1.msra.mxu0 %v87
  %832 = vmatprep.subr.mxu0 0.0
  %833 = vmatpush1.msra.mxu0 %v92
  %834 = vmatprep.subr.mxu0 0.0
  %835 = vmatpush1.msra.mxu0 %v97
  %836 = vmatprep.subr.mxu0 0.0
  %837 = vmatpush1.msra.mxu0 %v102
  %838 = vmatprep.subr.mxu0 0.0
  %839 = vmatpush1.msra.mxu0 %v107
  %840 = vmatprep.subr.mxu0 0.0
  %841 = vmatpush1.msra.mxu0 %v112
  %842 = vmatprep.subr.mxu0 0.0
  %843 = vmatpush1.msra.mxu0 %v117
  %844 = vmatprep.subr.mxu0 0.0
  %845 = vmatpush1.msra.mxu0 %v122
  %846 = vmatprep.subr.mxu0 0.0
  %847 = vmatpush1.msra.mxu0 %v127
  %848 = vmatprep.subr.mxu0 0.0
  %849 = vmatpush1.msra.mxu0 %v132
  %850 = vmatprep.subr.mxu0 0.0
  %851 = vmatpush1.msra.mxu0 %v137
  %852 = vmatprep.subr.mxu0 0.0
  %853 = vmatpush1.msra.mxu0 %v142
  %854 = vmatprep.subr.mxu0 0.0
  %855 = vmatpush1.msra.mxu0 %v147
  %856 = vmatprep.subr.mxu0 0.0
  %857 = vmatpush1.msra.mxu0 %v152
  %858 = vmatprep.subr.mxu0 0.0
  %859 = vmatpush1.msra.mxu0 %v157
  %860 = vmatprep.subr.mxu0 0.0
  %861 = vmatpush1.msra.mxu0 %v162
  %862 = vmatprep.subr.mxu0 0.0
  %863 = vmatpush1.msra.mxu0 %v167
  %864 = vmatprep.subr.mxu0 0.0
  %865 = vmatpush1.msra.mxu0 %v172
  %866 = vmatprep.subr.mxu0 0.0
  %867 = vmatpush1.msra.mxu0 %v177
  %868 = vmatprep.subr.mxu0 0.0
  %869 = vmatpush1.msra.mxu0 %v182
  %870 = vmatprep.subr.mxu0 0.0
  %871 = vmatpush1.msra.mxu0 %v187
  %872 = vmatprep.subr.mxu0 0.0
  %873 = vmatpush1.msra.mxu0 %v192
  %874 = vmatprep.subr.mxu0 0.0
  %875 = vmatpush1.msra.mxu0 %v197
  %876 = vmatprep.subr.mxu0 0.0
  %877 = vmatpush1.msra.mxu0 %v202
  %878 = vmatprep.subr.mxu0 0.0
  %879 = vmatpush1.msra.mxu0 %v207
  %880 = vmatprep.subr.mxu0 0.0
  %881 = vmatpush1.msra.mxu0 %v212
  %882 = vmatprep.mubr.f32.mxu0 %v21
  %883 = vmatmul.mubr.f32.gmra.mrb[0].mxu0 %v20
  %v884 = vpop.f32.mrb[0].mxu0
  %v885 = vadd.f32 %v254, %v884
  %v886 = vpop.f32.mrb[0].mxu0
  %887 = vmatprep.mubr.f32.mxu0 %v24
  %888 = vmatmul.mubr.f32.gmra.mrb[0].mxu0 %v23
  %v889 = vpop.f32.mrb[0].mxu0
  %v890 = vadd.f32 %v254, %v889
  %v891 = vpop.f32.mrb[0].mxu0
  %892 = vmatprep.mubr.f32.mxu0 %v27
  %893 = vmatmul.mubr.f32.gmra.mrb[0].mxu0 %v26
  %v894 = vpop.f32.mrb[0].mxu0
  %v895 = vadd.f32 %v254, %v894
  %v896 = vpop.f32.mrb[0].mxu0
  %897 = vmatprep.mubr.f32.mxu0 %v30
  %898 = vmatmul.mubr.f32.gmra.mrb[0].mxu0 %v29
  %v899 = vpop.f32.mrb[0].mxu0
  %v900 = vadd.f32 %v254, %v899
  %v901 = vpop.f32.mrb[0].mxu0
  %902 = vmatprep.mubr.f32.mxu0 %v33
  %903 = vmatmul.mubr.f32.gmra.mrb[0].mxu0 %v32
  %v904 = vpop.f32.mrb[0].mxu0
  %v905 = vadd.f32 %v254, %v904
  %v906 = vpop.f32.mrb[0].mxu0
  %907 = vmatprep.mubr.f32.mxu0 %v36
  %908 = vmatmul.mubr.f32.gmra.mrb[0].mxu0 %v35
  %v909 = vpop.f32.mrb[0].mxu0
  %v910 = vadd.f32 %v254, %v909
  %v911 = vpop.f32.mrb[0].mxu0
  %912 = vmatprep.mubr.f32.mxu0 %v39
  %913 = vmatmul.mubr.f32.gmra.mrb[0].mxu0 %v38
  %v914 = vpop.f32.mrb[0].mxu0
  %v915 = vadd.f32 %v254, %v914
  %v916 = vpop.f32.mrb[0].mxu0
  %917 = vmatprep.mubr.f32.mxu0 %v42
  %918 = vmatmul.mubr.f32.gmra.mrb[0].mxu0 %v41
  %v919 = vpop.f32.mrb[0].mxu0
  %v920 = vadd.f32 %v254, %v919
  %v921 = vpop.f32.mrb[0].mxu0
  %922 = vmatprep.mubr.f32.mxu0 %v45
  %923 = vmatmul.mubr.f32.gmra.mrb[0].mxu0 %v44
  %v924 = vpop.f32.mrb[0].mxu0
  %v925 = vadd.f32 %v254, %v924
  %v926 = vpop.f32.mrb[0].mxu0
  %927 = vmatprep.mubr.f32.mxu0 %v48
  %928 = vmatmul.mubr.f32.gmra.mrb[0].mxu0 %v47
  %v929 = vpop.f32.mrb[0].mxu0
  %v930 = vadd.f32 %v254, %v929
  %v931 = vpop.f32.mrb[0].mxu0
  %932 = vmatprep.mubr.f32.mxu0 %v51
  %933 = vmatmul.mubr.f32.gmra.mrb[0].mxu0 %v50
  %v934 = vpop.f32.mrb[0].mxu0
  %v935 = vadd.f32 %v254, %v934
  %v936 = vpop.f32.mrb[0].mxu0
  %937 = vdwg.mxu0
  %938 = vmatprep.subr.mxu0 0.0
  %939 = vmatpush1.msra.mxu0 %v217
  %940 = vmatprep.subr.mxu0 0.0
  %941 = vmatpush1.msra.mxu0 %v222
  %942 = vmatprep.subr.mxu0 0.0
  %943 = vmatpush1.msra.mxu0 %v227
  %944 = vmatprep.subr.mxu0 0.0
  %945 = vmatpush1.msra.mxu0 %v232
  %946 = vmatprep.subr.mxu0 0.0
  %947 = vmatpush1.msra.mxu0 0.0
  %948 = vmatprep.subr.mxu0 0.0
  %949 = vmatpush1.msra.mxu0 0.0
  %950 = vmatprep.subr.mxu0 0.0
  %951 = vmatpush1.msra.mxu0 0.0
  %952 = vmatprep.subr.mxu0 0.0
  %953 = vmatpush1.msra.mxu0 0.0
  %954 = vmatprep.subr.mxu0 0.0
  %955 = vmatpush1.msra.mxu0 0.0
  %956 = vmatprep.subr.mxu0 0.0
  %957 = vmatpush1.msra.mxu0 0.0
  %958 = vmatprep.subr.mxu0 0.0
  %959 = vmatpush1.msra.mxu0 0.0
  %960 = vmatprep.subr.mxu0 0.0
  %961 = vmatpush1.msra.mxu0 0.0
  %962 = vmatprep.subr.mxu0 0.0
  %963 = vmatpush1.msra.mxu0 0.0
  %964 = vmatprep.subr.mxu0 0.0
  %965 = vmatpush1.msra.mxu0 0.0
  %966 = vmatprep.subr.mxu0 0.0
  %967 = vmatpush1.msra.mxu0 0.0
  %968 = vmatprep.subr.mxu0 0.0
  %969 = vmatpush1.msra.mxu0 0.0
  %970 = vmatprep.subr.mxu0 0.0
  %971 = vmatpush1.msra.mxu0 0.0
  %972 = vmatprep.subr.mxu0 0.0
  %973 = vmatpush1.msra.mxu0 0.0
  %974 = vmatprep.subr.mxu0 0.0
  %975 = vmatpush1.msra.mxu0 0.0
  %976 = vmatprep.subr.mxu0 0.0
  %977 = vmatpush1.msra.mxu0 0.0
  %978 = vmatprep.subr.mxu0 0.0
  %979 = vmatpush1.msra.mxu0 0.0
  %980 = vmatprep.subr.mxu0 0.0
  %981 = vmatpush1.msra.mxu0 0.0
  %982 = vmatprep.subr.mxu0 0.0
  %983 = vmatpush1.msra.mxu0 0.0
  %984 = vmatprep.subr.mxu0 0.0
  %985 = vmatpush1.msra.mxu0 0.0
  %986 = vmatprep.subr.mxu0 0.0
  %987 = vmatpush1.msra.mxu0 0.0
  %988 = vmatprep.subr.mxu0 0.0
  %989 = vmatpush1.msra.mxu0 0.0
  %990 = vmatprep.subr.mxu0 0.0
  %991 = vmatpush1.msra.mxu0 0.0
  %992 = vmatprep.subr.mxu0 0.0
  %993 = vmatpush1.msra.mxu0 0.0
  %994 = vmatprep.subr.mxu0 0.0
  %995 = vmatpush1.msra.mxu0 0.0
  %996 = vmatprep.subr.mxu0 0.0
  %997 = vmatpush1.msra.mxu0 0.0
  %998 = vmatprep.subr.mxu0 0.0
  %999 = vmatpush1.msra.mxu0 0.0
  %1000 = vmatprep.subr.mxu0 0.0
  %1001 = vmatpush1.msra.mxu0 0.0
  %1002 = vmatprep.mubr.f32.mxu0 0.0
  %1003 = vmatmul.mubr.f32.gmra.mrb[0].mxu0 %v262
  %v1004 = vpop.f32.mrb[0].mxu0
  %v1005 = vadd.f32 %v885, %v1004
  %v1006 = vpop.f32.mrb[0].mxu0
  %1007 = vmatprep.mubr.f32.mxu0 0.0
  %1008 = vmatmul.mubr.f32.gmra.mrb[0].mxu0 %v265
  %v1009 = vpop.f32.mrb[0].mxu0
  %v1010 = vadd.f32 %v890, %v1009
  %v1011 = vpop.f32.mrb[0].mxu0
  %1012 = vmatprep.mubr.f32.mxu0 0.0
  %1013 = vmatmul.mubr.f32.gmra.mrb[0].mxu0 %v268
  %v1014 = vpop.f32.mrb[0].mxu0
  %v1015 = vadd.f32 %v895, %v1014
  %v1016 = vpop.f32.mrb[0].mxu0
  %1017 = vmatprep.mubr.f32.mxu0 0.0
  %1018 = vmatmul.mubr.f32.gmra.mrb[0].mxu0 %v271
  %v1019 = vpop.f32.mrb[0].mxu0
  %v1020 = vadd.f32 %v900, %v1019
  %v1021 = vpop.f32.mrb[0].mxu0
  %1022 = vmatprep.mubr.f32.mxu0 0.0
  %1023 = vmatmul.mubr.f32.gmra.mrb[0].mxu0 %v274
  %v1024 = vpop.f32.mrb[0].mxu0
  %v1025 = vadd.f32 %v905, %v1024
  %v1026 = vpop.f32.mrb[0].mxu0
  %1027 = vmatprep.mubr.f32.mxu0 0.0
  %1028 = vmatmul.mubr.f32.gmra.mrb[0].mxu0 %v277
  %v1029 = vpop.f32.mrb[0].mxu0
  %v1030 = vadd.f32 %v910, %v1029
  %v1031 = vpop.f32.mrb[0].mxu0
  %1032 = vmatprep.mubr.f32.mxu0 0.0
  %1033 = vmatmul.mubr.f32.gmra.mrb[0].mxu0 %v280
  %v1034 = vpop.f32.mrb[0].mxu0
  %v1035 = vadd.f32 %v915, %v1034
  %v1036 = vpop.f32.mrb[0].mxu0
  %1037 = vmatprep.mubr.f32.mxu0 0.0
  %1038 = vmatmul.mubr.f32.gmra.mrb[0].mxu0 %v283
  %v1039 = vpop.f32.mrb[0].mxu0
  %v1040 = vadd.f32 %v920, %v1039
  %v1041 = vpop.f32.mrb[0].mxu0
  %1042 = vmatprep.mubr.f32.mxu0 0.0
  %1043 = vmatmul.mubr.f32.gmra.mrb[0].mxu0 %v286
  %v1044 = vpop.f32.mrb[0].mxu0
  %v1045 = vadd.f32 %v925, %v1044
  %v1046 = vpop.f32.mrb[0].mxu0
  %1047 = vmatprep.mubr.f32.mxu0 0.0
  %1048 = vmatmul.mubr.f32.gmra.mrb[0].mxu0 %v289
  %v1049 = vpop.f32.mrb[0].mxu0
  %v1050 = vadd.f32 %v930, %v1049
  %v1051 = vpop.f32.mrb[0].mxu0
  %1052 = vmatprep.mubr.f32.mxu0 0.0
  %1053 = vmatmul.mubr.f32.gmra.mrb[0].mxu0 %v292
  %v1054 = vpop.f32.mrb[0].mxu0
  %v1055 = vadd.f32 %v935, %v1054
  %v1056 = vpop.f32.mrb[0].mxu0
  %1057 = vdwg.mxu0
  %v1058 = vld [vmem:[%s3] sm:$0xff]
  %v1059 = vld [vmem:[%s3 + $0x8] sm:$0xff]
  %v1060 = vld [vmem:[%s3 + $0x10] sm:$0xff]
  %v1061 = vld [vmem:[%s3 + $0x18] sm:$0xff]
  %v1062 = vld [vmem:[%s3 + $0x20] sm:$0xff]
  %v1063 = vld [vmem:[%s3 + $0x28] sm:$0xff]
  %v1064 = vld [vmem:[%s3 + $0x30] sm:$0xff]
  %v1065 = vld [vmem:[%s3 + $0x38] sm:$0xff]
  %v1066 = vld [vmem:[%s3 + $0x40] sm:$0xff]
  %v1067 = vld [vmem:[%s3 + $0x48] sm:$0xff]
  %v1068 = vld [vmem:[%s3 + $0x50] sm:$0xff]
  %v1069 = vld [vmem:[%s3 + $0x58] sm:$0xff]
  %v1070 = vld [vmem:[%s3 + $0x60] sm:$0xff]
  %v1071 = vld [vmem:[%s3 + $0x68] sm:$0xff]
  %v1072 = vld [vmem:[%s3 + $0x70] sm:$0xff]
  %v1073 = vld [vmem:[%s3 + $0x78] sm:$0xff]
  %v1074 = vld [vmem:[%s3 + $0x80] sm:$0xff]
  %v1075 = vld [vmem:[%s3 + $0x88] sm:$0xff]
  %v1076 = vld [vmem:[%s3 + $0x90] sm:$0xff]
  %v1077 = vld [vmem:[%s3 + $0x98] sm:$0xff]
  %v1078 = vld [vmem:[%s3 + $0xa0] sm:$0xff]
  %v1079 = vld [vmem:[%s3 + $0xa8] sm:$0xff]
  %v1080 = vld [vmem:[%s3 + $0xb0] sm:$0xff]
  %v1081 = vld [vmem:[%s3 + $0xb8] sm:$0xff]
  %v1082 = vld [vmem:[%s3 + $0xc0] sm:$0xff]
  %v1083 = vld [vmem:[%s3 + $0xc8] sm:$0xff]
  %v1084 = vld [vmem:[%s3 + $0xd0] sm:$0xff]
  %v1085 = vld [vmem:[%s3 + $0xd8] sm:$0xff]
  %v1086 = vld [vmem:[%s3 + $0xe0] sm:$0xff]
  %v1087 = vld [vmem:[%s3 + $0xe8] sm:$0xff]
  %v1088 = vld [vmem:[%s3 + $0xf0] sm:$0xff]
  %v1089 = vld [vmem:[%s3 + $0xf8] sm:$0xff]
  %v1090 = vld [vmem:[%s3 + $0x100] sm:$0xff]
  %v1091 = vld [vmem:[%s3 + $0x108] sm:$0xff]
  %v1092 = vld [vmem:[%s3 + $0x110] sm:$0xff]
  %v1093 = vld [vmem:[%s3 + $0x118] sm:$0xff]
  %v1094 = vld [vmem:[%s3 + $0x120] sm:$0xff]
  %v1095 = vld [vmem:[%s3 + $0x128] sm:$0xff]
  %v1096 = vld [vmem:[%s3 + $0x130] sm:$0xff]
  %v1097 = vld [vmem:[%s3 + $0x138] sm:$0xff]
  %v1098 = vld [vmem:[%s3 + $0x140] sm:$0xff]
  %v1099 = vld [vmem:[%s3 + $0x148] sm:$0xff]
  %v1100 = vld [vmem:[%s3 + $0x150] sm:$0xff]
  %v1101 = vld [vmem:[%s3 + $0x158] sm:$0xff]
  %v1102 = vld [vmem:[%s3 + $0x160] sm:$0xff]
  %v1103 = vld [vmem:[%s3 + $0x168] sm:$0xff]
  %v1104 = vld [vmem:[%s3 + $0x170] sm:$0xff]
  %v1105 = vld [vmem:[%s3 + $0x178] sm:$0xff]
  %v1106 = vld [vmem:[%s3 + $0x180] sm:$0xff]
  %v1107 = vld [vmem:[%s3 + $0x188] sm:$0xff]
  %v1108 = vld [vmem:[%s3 + $0x190] sm:$0xff]
  %v1109 = vld [vmem:[%s3 + $0x198] sm:$0xff]
  %v1110 = vld [vmem:[%s3 + $0x1a0] sm:$0xff]
  %v1111 = vld [vmem:[%s3 + $0x1a8] sm:$0xff]
  %v1112 = vld [vmem:[%s3 + $0x1b0] sm:$0xff]
  %v1113 = vadd.f32 %v492, %v1058
  %v1114 = vadd.f32 %v494, %v1059
  %v1115 = vadd.f32 %v754, %v1060
  %v1116 = vadd.f32 %v756, %v1061
  %v1117 = vadd.f32 %v1005, %v1062
  %v1118 = vadd.f32 %v498, %v1063
  %v1119 = vadd.f32 %v500, %v1064
  %v1120 = vadd.f32 %v760, %v1065
  %v1121 = vadd.f32 %v762, %v1066
  %v1122 = vadd.f32 %v1010, %v1067
  %v1123 = vadd.f32 %v504, %v1068
  %v1124 = vadd.f32 %v506, %v1069
  %v1125 = vadd.f32 %v766, %v1070
  %v1126 = vadd.f32 %v768, %v1071
  %v1127 = vadd.f32 %v1015, %v1072
  %v1128 = vadd.f32 %v510, %v1073
  %v1129 = vadd.f32 %v512, %v1074
  %v1130 = vadd.f32 %v772, %v1075
  %v1131 = vadd.f32 %v774, %v1076
  %v1132 = vadd.f32 %v1020, %v1077
  %v1133 = vadd.f32 %v516, %v1078
  %v1134 = vadd.f32 %v518, %v1079
  %v1135 = vadd.f32 %v778, %v1080
  %v1136 = vadd.f32 %v780, %v1081
  %v1137 = vadd.f32 %v1025, %v1082
  %v1138 = vadd.f32 %v522, %v1083
  %v1139 = vadd.f32 %v524, %v1084
  %v1140 = vadd.f32 %v784, %v1085
  %v1141 = vadd.f32 %v786, %v1086
  %v1142 = vadd.f32 %v1030, %v1087
  %v1143 = vadd.f32 %v528, %v1088
  %v1144 = vadd.f32 %v530, %v1089
  %v1145 = vadd.f32 %v790, %v1090
  %v1146 = vadd.f32 %v792, %v1091
  %v1147 = vadd.f32 %v1035, %v1092
  %v1148 = vadd.f32 %v534, %v1093
  %v1149 = vadd.f32 %v536, %v1094
  %v1150 = vadd.f32 %v796, %v1095
  %v1151 = vadd.f32 %v798, %v1096
  %v1152 = vadd.f32 %v1040, %v1097
  %v1153 = vadd.f32 %v540, %v1098
  %v1154 = vadd.f32 %v542, %v1099
  %v1155 = vadd.f32 %v802, %v1100
  %v1156 = vadd.f32 %v804, %v1101
  %v1157 = vadd.f32 %v1045, %v1102
  %v1158 = vadd.f32 %v546, %v1103
  %v1159 = vadd.f32 %v548, %v1104
  %v1160 = vadd.f32 %v808, %v1105
  %v1161 = vadd.f32 %v810, %v1106
  %v1162 = vadd.f32 %v1050, %v1107
  %v1163 = vadd.f32 %v552, %v1108
  %v1164 = vadd.f32 %v554, %v1109
  %v1165 = vadd.f32 %v814, %v1110
  %v1166 = vadd.f32 %v816, %v1111
  %v1167 = vadd.f32 %v1055, %v1112
  %v1168 = vld [vmem:[%s4] sm:$0xff]
  %v1169 = vld [vmem:[%s4 + $0x8] sm:$0xff]
  %v1170 = vld [vmem:[%s4 + $0x10] sm:$0xff]
  %v1171 = vld [vmem:[%s4 + $0x18] sm:$0xff]
  %v1172 = vld [vmem:[%s4 + $0x20] sm:$0xff]
  %v1173 = vld [vmem:[%s4 + $0x28] sm:$0xff]
  %v1174 = vld [vmem:[%s4 + $0x30] sm:$0xff]
  %v1175 = vld [vmem:[%s4 + $0x38] sm:$0xff]
  %v1176 = vld [vmem:[%s4 + $0x40] sm:$0xff]
  %v1177 = vld [vmem:[%s4 + $0x48] sm:$0xff]
  %v1178 = vld [vmem:[%s4 + $0x50] sm:$0xff]
  %v1179 = vld [vmem:[%s4 + $0x58] sm:$0xff]
  %v1180 = vld [vmem:[%s4 + $0x60] sm:$0xff]
  %v1181 = vld [vmem:[%s4 + $0x68] sm:$0xff]
  %v1182 = vld [vmem:[%s4 + $0x70] sm:$0xff]
  %v1183 = vld [vmem:[%s4 + $0x78] sm:$0xff]
  %v1184 = vld [vmem:[%s4 + $0x80] sm:$0xff]
  %v1185 = vld [vmem:[%s4 + $0x88] sm:$0xff]
  %v1186 = vld [vmem:[%s4 + $0x90] sm:$0xff]
  %v1187 = vld [vmem:[%s4 + $0x98] sm:$0xff]
  %v1188 = vld [vmem:[%s4 + $0xa0] sm:$0xff]
  %v1189 = vld [vmem:[%s4 + $0xa8] sm:$0xff]
  %v1190 = vld [vmem:[%s4 + $0xb0] sm:$0xff]
  %v1191 = vld [vmem:[%s4 + $0xb8] sm:$0xff]
  %v1192 = vld [vmem:[%s4 + $0xc0] sm:$0xff]
  %v1193 = vld [vmem:[%s4 + $0xc8] sm:$0xff]
  %v1194 = vld [vmem:[%s4 + $0xd0] sm:$0xff]
  %v1195 = vld [vmem:[%s4 + $0xd8] sm:$0xff]
  %v1196 = vld [vmem:[%s4 + $0xe0] sm:$0xff]
  %v1197 = vld [vmem:[%s4 + $0xe8] sm:$0xff]
  %v1198 = vld [vmem:[%s4 + $0xf0] sm:$0xff]
  %v1199 = vld [vmem:[%s4 + $0xf8] sm:$0xff]
  %v1200 = vld [vmem:[%s4 + $0x100] sm:$0xff]
  %v1201 = vld [vmem:[%s4 + $0x108] sm:$0xff]
  %v1202 = vld [vmem:[%s4 + $0x110] sm:$0xff]
  %v1203 = vld [vmem:[%s4 + $0x118] sm:$0xff]
  %v1204 = vld [vmem:[%s4 + $0x120] sm:$0xff]
  %v1205 = vld [vmem:[%s4 + $0x128] sm:$0xff]
  %v1206 = vld [vmem:[%s4 + $0x130] sm:$0xff]
  %v1207 = vld [vmem:[%s4 + $0x138] sm:$0xff]
  %v1208 = vld [vmem:[%s4 + $0x140] sm:$0xff]
  %v1209 = vld [vmem:[%s4 + $0x148] sm:$0xff]
  %v1210 = vld [vmem:[%s4 + $0x150] sm:$0xff]
  %v1211 = vld [vmem:[%s4 + $0x158] sm:$0xff]
  %v1212 = vld [vmem:[%s4 + $0x160] sm:$0xff]
  %v1213 = vld [vmem:[%s4 + $0x168] sm:$0xff]
  %v1214 = vld [vmem:[%s4 + $0x170] sm:$0xff]
  %v1215 = vld [vmem:[%s4 + $0x178] sm:$0xff]
  %v1216 = vld [vmem:[%s4 + $0x180] sm:$0xff]
  %v1217 = vld [vmem:[%s4 + $0x188] sm:$0xff]
  %v1218 = vld [vmem:[%s4 + $0x190] sm:$0xff]
  %v1219 = vld [vmem:[%s4 + $0x198] sm:$0xff]
  %v1220 = vld [vmem:[%s4 + $0x1a0] sm:$0xff]
  %v1221 = vld [vmem:[%s4 + $0x1a8] sm:$0xff]
  %v1222 = vld [vmem:[%s4 + $0x1b0] sm:$0xff]
  %v1223 = vadd.f32 %v1113, %v1168
  %v1224 = vadd.f32 %v1114, %v1169
  %v1225 = vadd.f32 %v1115, %v1170
  %v1226 = vadd.f32 %v1116, %v1171
  %v1227 = vadd.f32 %v1117, %v1172
  %v1228 = vadd.f32 %v1118, %v1173
  %v1229 = vadd.f32 %v1119, %v1174
  %v1230 = vadd.f32 %v1120, %v1175
  %v1231 = vadd.f32 %v1121, %v1176
  %v1232 = vadd.f32 %v1122, %v1177
  %v1233 = vadd.f32 %v1123, %v1178
  %v1234 = vadd.f32 %v1124, %v1179
  %v1235 = vadd.f32 %v1125, %v1180
  %v1236 = vadd.f32 %v1126, %v1181
  %v1237 = vadd.f32 %v1127, %v1182
  %v1238 = vadd.f32 %v1128, %v1183
  %v1239 = vadd.f32 %v1129, %v1184
  %v1240 = vadd.f32 %v1130, %v1185
  %v1241 = vadd.f32 %v1131, %v1186
  %v1242 = vadd.f32 %v1132, %v1187
  %v1243 = vadd.f32 %v1133, %v1188
  %v1244 = vadd.f32 %v1134, %v1189
  %v1245 = vadd.f32 %v1135, %v1190
  %v1246 = vadd.f32 %v1136, %v1191
  %v1247 = vadd.f32 %v1137, %v1192
  %v1248 = vadd.f32 %v1138, %v1193
  %v1249 = vadd.f32 %v1139, %v1194
  %v1250 = vadd.f32 %v1140, %v1195
  %v1251 = vadd.f32 %v1141, %v1196
  %v1252 = vadd.f32 %v1142, %v1197
  %v1253 = vadd.f32 %v1143, %v1198
  %v1254 = vadd.f32 %v1144, %v1199
  %v1255 = vadd.f32 %v1145, %v1200
  %v1256 = vadd.f32 %v1146, %v1201
  %v1257 = vadd.f32 %v1147, %v1202
  %v1258 = vadd.f32 %v1148, %v1203
  %v1259 = vadd.f32 %v1149, %v1204
  %v1260 = vadd.f32 %v1150, %v1205
  %v1261 = vadd.f32 %v1151, %v1206
  %v1262 = vadd.f32 %v1152, %v1207
  %v1263 = vadd.f32 %v1153, %v1208
  %v1264 = vadd.f32 %v1154, %v1209
  %v1265 = vadd.f32 %v1155, %v1210
  %v1266 = vadd.f32 %v1156, %v1211
  %v1267 = vadd.f32 %v1157, %v1212
  %v1268 = vadd.f32 %v1158, %v1213
  %v1269 = vadd.f32 %v1159, %v1214
  %v1270 = vadd.f32 %v1160, %v1215
  %v1271 = vadd.f32 %v1161, %v1216
  %v1272 = vadd.f32 %v1162, %v1217
  %v1273 = vadd.f32 %v1163, %v1218
  %v1274 = vadd.f32 %v1164, %v1219
  %v1275 = vadd.f32 %v1165, %v1220
  %v1276 = vadd.f32 %v1166, %v1221
  %v1277 = vadd.f32 %v1167, %v1222
  %1278 = vst [vmem:[%s5] sm:$0xff] %v1223
  %1279 = vst [vmem:[%s5 + $0x8] sm:$0xff] %v1224
  %1280 = vst [vmem:[%s5 + $0x10] sm:$0xff] %v1225
  %1281 = vst [vmem:[%s5 + $0x18] sm:$0xff] %v1226
  %vm1282 = vcmask 392192
  %1283 = vst.msk [vmem:[%s5 + $0x20] sm:$0xff] %vm1282, %v1227
  %1284 = vst [vmem:[%s5 + $0x28] sm:$0xff] %v1228
  %1285 = vst [vmem:[%s5 + $0x30] sm:$0xff] %v1229
  %1286 = vst [vmem:[%s5 + $0x38] sm:$0xff] %v1230
  %1287 = vst [vmem:[%s5 + $0x40] sm:$0xff] %v1231
  %1288 = vst.msk [vmem:[%s5 + $0x48] sm:$0xff] %vm1282, %v1232
  %1289 = vst [vmem:[%s5 + $0x50] sm:$0xff] %v1233
  %1290 = vst [vmem:[%s5 + $0x58] sm:$0xff] %v1234
  %1291 = vst [vmem:[%s5 + $0x60] sm:$0xff] %v1235
  %1292 = vst [vmem:[%s5 + $0x68] sm:$0xff] %v1236
  %1293 = vst.msk [vmem:[%s5 + $0x70] sm:$0xff] %vm1282, %v1237
  %1294 = vst [vmem:[%s5 + $0x78] sm:$0xff] %v1238
  %1295 = vst [vmem:[%s5 + $0x80] sm:$0xff] %v1239
  %1296 = vst [vmem:[%s5 + $0x88] sm:$0xff] %v1240
  %1297 = vst [vmem:[%s5 + $0x90] sm:$0xff] %v1241
  %1298 = vst.msk [vmem:[%s5 + $0x98] sm:$0xff] %vm1282, %v1242
  %1299 = vst [vmem:[%s5 + $0xa0] sm:$0xff] %v1243
  %1300 = vst [vmem:[%s5 + $0xa8] sm:$0xff] %v1244
  %1301 = vst [vmem:[%s5 + $0xb0] sm:$0xff] %v1245
  %1302 = vst [vmem:[%s5 + $0xb8] sm:$0xff] %v1246
  %1303 = vst.msk [vmem:[%s5 + $0xc0] sm:$0xff] %vm1282, %v1247
  %1304 = vst [vmem:[%s5 + $0xc8] sm:$0xff] %v1248
  %1305 = vst [vmem:[%s5 + $0xd0] sm:$0xff] %v1249
  %1306 = vst [vmem:[%s5 + $0xd8] sm:$0xff] %v1250
  %1307 = vst [vmem:[%s5 + $0xe0] sm:$0xff] %v1251
  %1308 = vst.msk [vmem:[%s5 + $0xe8] sm:$0xff] %vm1282, %v1252
  %1309 = vst [vmem:[%s5 + $0xf0] sm:$0xff] %v1253
  %1310 = vst [vmem:[%s5 + $0xf8] sm:$0xff] %v1254
  %1311 = vst [vmem:[%s5 + $0x100] sm:$0xff] %v1255
  %1312 = vst [vmem:[%s5 + $0x108] sm:$0xff] %v1256
  %1313 = vst.msk [vmem:[%s5 + $0x110] sm:$0xff] %vm1282, %v1257
  %1314 = vst [vmem:[%s5 + $0x118] sm:$0xff] %v1258
  %1315 = vst [vmem:[%s5 + $0x120] sm:$0xff] %v1259
  %1316 = vst [vmem:[%s5 + $0x128] sm:$0xff] %v1260
  %1317 = vst [vmem:[%s5 + $0x130] sm:$0xff] %v1261
  %1318 = vst.msk [vmem:[%s5 + $0x138] sm:$0xff] %vm1282, %v1262
  %1319 = vst [vmem:[%s5 + $0x140] sm:$0xff] %v1263
  %1320 = vst [vmem:[%s5 + $0x148] sm:$0xff] %v1264
  %1321 = vst [vmem:[%s5 + $0x150] sm:$0xff] %v1265
  %1322 = vst [vmem:[%s5 + $0x158] sm:$0xff] %v1266
  %1323 = vst.msk [vmem:[%s5 + $0x160] sm:$0xff] %vm1282, %v1267
  %1324 = vst [vmem:[%s5 + $0x168] sm:$0xff] %v1268
  %1325 = vst [vmem:[%s5 + $0x170] sm:$0xff] %v1269
  %1326 = vst [vmem:[%s5 + $0x178] sm:$0xff] %v1270
  %1327 = vst [vmem:[%s5 + $0x180] sm:$0xff] %v1271
  %1328 = vst.msk [vmem:[%s5 + $0x188] sm:$0xff] %vm1282, %v1272
  %1329 = vst [vmem:[%s5 + $0x190] sm:$0xff] %v1273
  %1330 = vst [vmem:[%s5 + $0x198] sm:$0xff] %v1274
  %1331 = vst [vmem:[%s5 + $0x1a0] sm:$0xff] %v1275
  %1332 = vst [vmem:[%s5 + $0x1a8] sm:$0xff] %v1276
  %1333 = vst.msk [vmem:[%s5 + $0x1b0] sm:$0xff] %vm1282, %v1277
  // Predicated region
  $region22: #{_conv1x1_pad1_fused.1} parent=0 // pred_check
    _
  $region23: #{_conv1x1_pad1_fused.1} parent=0 // pred_check_branch
    %1335 = sbr.rel (0) target = $region25
  $region24: #{_conv1x1_pad1_fused.1} parent=0 // pred_region
    _
  $region25: #{_conv1x1_pad1_fused.1} parent=0 // pred_fallthru
    _
  // Predicated region
  $region26: #{_conv1x1_pad1_fused.1} parent=0 // pred_check
    _
  $region27: #{_conv1x1_pad1_fused.1} parent=0 // pred_check_branch
    %1337 = sbr.rel (0) target = $region29
  $region28: #{_conv1x1_pad1_fused.1} parent=0 // pred_region
    _
  $region29: #{_conv1x1_pad1_fused.1} parent=0 // pred_fallthru
    _

</llo_original>
